<compile_context>
chip_gen: v5e
topology: v5e:2x2
jax: 0.10.0
libtpu: 0.0.40
codegen_flags: <defaults>
</compile_context>

<pallas_src>
import functools

import jax
import jax.numpy as jnp
from jax import lax
from jax.experimental import pallas as pl
from jax.experimental.pallas import tpu as pltpu

IN_FEATURES = 64
INTERM = (64, 32)          # interm_size default [64, 32]
BN_EPS = 1e-5
LRELU_SLOPE = 0.01         # torch.nn.LeakyReLU default
PD_EPS = 1e-6              # torch pairwise_distance eps (added to the difference)


def _round_up(n, m):
    return ((n + m - 1) // m) * m


def _cdiv(a, b):
    return (a + b - 1) // b


def _leaky_relu(x):
    return jnp.where(x >= 0, x, LRELU_SLOPE * x)


def _vmem_capacity_bytes():
    """Per-core VMEM capacity; conservative default if the query is unavailable."""
    try:
        info = pltpu.get_tpu_info()
        cap = int(getattr(info, "vmem_capacity_bytes", 0) or 0)
        if cap > 0:
            return cap
    except Exception:
        pass
    return 64 * 1024 * 1024   # v7x physical VMEM per TensorCore (smallest generation)


# --------------------- Fused path: whole batch resident in VMEM ---------------------
def _fused_kernel(a_ref, x_ref, w1_ref, gamma_ref, beta_ref, w2_ref, b2_ref,
                  out_ref, *, n_real):
    """Single-kernel forward: exact two-pass BN stats + both layers + distance."""
    n_pad = a_ref.shape[0] - n_real          # zero-padded rows (static)
    inv_n = 1.0 / float(n_real)
    gamma = gamma_ref[...]
    beta = beta_ref[...]
    w1 = w1_ref[...]
    w2 = w2_ref[...]
    b2 = b2_ref[...]

    def encode(x):
        h = jnp.dot(x, w1, preferred_element_type=jnp.float32)          # (Bp, F1)
        # Training-mode BatchNorm over the real rows only. Padded rows are exact
        # zeros -> contribute nothing to the sum; their (0-mean)^2 contribution to
        # the centered sum is subtracted analytically (n_pad * mean^2).
        mean = jnp.sum(h, axis=0, keepdims=True) * inv_n
        cen = h - mean
        m2 = jnp.sum(cen * cen, axis=0, keepdims=True) - float(n_pad) * mean * mean
        var = jnp.maximum(m2 * inv_n, 0.0)                               # biased var
        scale = gamma * lax.rsqrt(var + BN_EPS)
        shift = beta - mean * scale           # Linear bias b1 cancels under the mean
        h = _leaky_relu(h * scale + shift)
        z = jnp.dot(h, w2, preferred_element_type=jnp.float32) + b2
        return _leaky_relu(z)

    za = encode(a_ref[...])
    zx = encode(x_ref[...])
    diff = za - zx + PD_EPS                                              # (Bp, 32)
    d2 = jnp.sum(diff * diff, axis=-1, keepdims=True)                    # (Bp, 1)
    out_ref[...] = jnp.sqrt(jnp.transpose(d2))                           # (1, Bp) lane-dense


# -------------- Tiled pass 1: per-core BN statistics (Chan's combine) ---------------
def _bn_stats_kernel(a_ref, x_ref, w1_ref, out_ref, *,
                     n_real, tile_rows, tiles_per_core):
    """Per-core running (mean, M2) of h = x @ W1 for each branch.

    Grid = (core, tile). The leading 'parallel' axis lets v7x shard the reduction
    across both TensorCores; on v5e/v6e the two core-slices just run back to back.
    Accumulates directly into the VMEM-resident output block (no scratch).
    """
    c = pl.program_id(0)
    i = pl.program_id(1)

    @pl.when(i == 0)
    def _():
        out_ref[...] = jnp.zeros_like(out_ref)

    t = c * tiles_per_core + i                       # global tile index
    row0 = t * tile_rows
    core_row0 = c * (tiles_per_core * tile_rows)

    # Real-row bookkeeping (scalars). Padded rows never enter the statistics.
    n_tile = jnp.clip(n_real - row0, 0, tile_rows).astype(jnp.float32)
    n_prev = (jnp.minimum(row0, n_real) -
              jnp.minimum(core_row0, n_real)).astype(jnp.float32)
    n_new = n_prev + n_tile
    inv_new = 1.0 / jnp.maximum(n_new, 1.0)

    rows = lax.broadcasted_iota(jnp.int32, (tile_rows, 1), 0)
    valid = ((rows + row0) < n_real).astype(jnp.float32)                 # (TB, 1)

    w1 = w1_ref[...]

    def tile_stats(x):
        h = jnp.dot(x, w1, preferred_element_type=jnp.float32)           # (TB, F1)
        s = jnp.sum(h, axis=0, keepdims=True)          # padded rows are zero
        mean = s / jnp.maximum(n_tile, 1.0)
        d = (h - mean) * valid                          # mask padded rows out of M2
        m2 = jnp.sum(d * d, axis=0, keepdims=True)
        return mean, m2

    def chan(run_mean, run_m2, t_mean, t_m2):
        delta = t_mean - run_mean
        mean = run_mean + delta * (n_tile * inv_new)
        m2 = run_m2 + t_m2 + (delta * delta) * (n_prev * n_tile * inv_new)
        return mean, m2

    acc = out_ref[...]                                                   # (1, 4, F1)
    tma, tm2a = tile_stats(a_ref[...])
    tmx, tm2x = tile_stats(x_ref[...])
    mean_a, m2_a = chan(acc[0, 0:1, :], acc[0, 1:2, :], tma, tm2a)
    mean_x, m2_x = chan(acc[0, 2:3, :], acc[0, 3:4, :], tmx, tm2x)
    out_ref[...] = jnp.concatenate([mean_a, m2_a, mean_x, m2_x], axis=0)[None]


# ------------------------- Tiled pass 2: main forward pass --------------------------
def _siamese_main_kernel(a_ref, x_ref, w1_ref, ss_ref, w2_ref, b2_ref, out_ref):
    w1 = w1_ref[...]
    w2 = w2_ref[...]
    b2 = b2_ref[...]
    ss = ss_ref[...]                                                     # (4, F1)

    def encode(x, scale, shift):
        h = jnp.dot(x, w1, preferred_element_type=jnp.float32)           # (TB, F1)
        h = _leaky_relu(h * scale + shift)       # BN (+ bias, folded) per branch
        z = jnp.dot(h, w2, preferred_element_type=jnp.float32) + b2
        return _leaky_relu(z)                                            # (TB, F2)

    za = encode(a_ref[...], ss[0:1], ss[1:2])
    zx = encode(x_ref[...], ss[2:3], ss[3:4])
    diff = za - zx + PD_EPS
    d2 = jnp.sum(diff * diff, axis=-1, keepdims=True)                    # (TB, 1)
    out_ref[...] = jnp.sqrt(jnp.transpose(d2))                           # (1, TB) lane-dense


# ------------------------------------- wrapper --------------------------------------
def siamese_forward(A, X, params, *, max_batch_tile=8192, force_tiled=False):
    """Pairwise L2 distance between enc(A) and enc(X); returns shape (B,)."""
    w1, b1, gamma, beta, w2, b2 = params
    del b1   # cancels exactly under the BatchNorm mean subtraction

    B, F_in = A.shape
    F1 = w1.shape[1]
    F2 = w2.shape[1]

    vmem_cap = _vmem_capacity_bytes()
    vmem_limit = int(max(32 * 2**20, min(vmem_cap * 3 // 4, 100 * 2**20)))

    # ------------------ fused single-kernel path (batch fits in VMEM) ------------------
    B_pad8 = _round_up(B, 8)
    # rough VMEM need: A/X inputs + h_a/h_x + z_a/z_x (f32) + temporaries + slack
    fused_bytes = B_pad8 * (2 * F_in + 3 * F1 + 2 * F2) * 4 + (2 << 20)
    if (not force_tiled) and fused_bytes <= min(vmem_cap // 2, vmem_limit):
        if B_pad8 != B:
            pad = ((0, B_pad8 - B), (0, 0))
            A_p, X_p = jnp.pad(A, pad), jnp.pad(X, pad)
        else:
            A_p, X_p = A, X
        full = lambda shape: pl.BlockSpec(shape, lambda i: (0, 0))
        dist = pl.pallas_call(
            functools.partial(_fused_kernel, n_real=B),
            out_shape=jax.ShapeDtypeStruct((1, B_pad8), jnp.float32),
            grid=(1,),
            in_specs=[full((B_pad8, F_in)), full((B_pad8, F_in)),
                      full((F_in, F1)), full((1, F1)), full((1, F1)),
                      full((F1, F2)), full((1, F2))],
            out_specs=full((1, B_pad8)),
            compiler_params=pltpu.CompilerParams(
                dimension_semantics=("arbitrary",),
                vmem_limit_bytes=vmem_limit),
        )(A_p, X_p, w1, gamma, beta, w2, b2)
        return dist[0, :B]

    # ------------------------ tiled two-pass path (large batch) ------------------------
    max_tb = max(128, (max_batch_tile // 128) * 128)
    num_tiles = 2 * _cdiv(_cdiv(B, max_tb), 2)       # even -> 2-way core split on v7x
    TB = _round_up(_cdiv(B, num_tiles), 128)         # balanced tiles (<128 pad rows/tile)
    half = num_tiles // 2
    B_pad = num_tiles * TB

    if B_pad != B:
        pad = ((0, B_pad - B), (0, 0))
        A_p, X_p = jnp.pad(A, pad), jnp.pad(X, pad)
    else:
        A_p, X_p = A, X

    # Pass 1: per-core (mean, M2) partials of h = x @ W1, Chan-combined across tiles.
    stats = pl.pallas_call(
        functools.partial(_bn_stats_kernel, n_real=B, tile_rows=TB,
                          tiles_per_core=half),
        out_shape=jax.ShapeDtypeStruct((2, 4, F1), jnp.float32),
        grid=(2, half),
        in_specs=[pl.BlockSpec((TB, F_in), lambda c, i, h=half: (c * h + i, 0)),
                  pl.BlockSpec((TB, F_in), lambda c, i, h=half: (c * h + i, 0)),
                  pl.BlockSpec((F_in, F1), lambda c, i: (0, 0))],
        out_specs=pl.BlockSpec((1, 4, F1), lambda c, i: (c, 0, 0)),
        compiler_params=pltpu.CompilerParams(
            dimension_semantics=("parallel", "arbitrary"),
            vmem_limit_bytes=vmem_limit),
    )(A_p, X_p, w1)

    # Combine the two per-core partials (Chan) and fold BN into (scale, shift) — tiny.
    n0 = float(min(B, half * TB))
    n1 = float(B) - n0

    def combine(mean0, m20, mean1, m21):
        delta = mean1 - mean0
        mean = mean0 + delta * (n1 / float(B))
        m2 = m20 + m21 + delta * delta * (n0 * n1 / float(B))
        return mean, m2

    mean_a, m2_a = combine(stats[0, 0], stats[0, 1], stats[1, 0], stats[1, 1])
    mean_x, m2_x = combine(stats[0, 2], stats[0, 3], stats[1, 2], stats[1, 3])
    var_a = jnp.maximum(m2_a / float(B), 0.0)          # biased (training-mode) variance
    var_x = jnp.maximum(m2_x / float(B), 0.0)
    scale_a = gamma[0] * lax.rsqrt(var_a + BN_EPS)
    scale_x = gamma[0] * lax.rsqrt(var_x + BN_EPS)
    shift_a = beta[0] - mean_a * scale_a
    shift_x = beta[0] - mean_x * scale_x
    scale_shift = jnp.stack([scale_a, shift_a, scale_x, shift_x], axis=0)   # (4, F1)

    # Pass 2: batch-parallel pipelined main pass, lane-dense (1, B_pad) output.
    resident = lambda shape: pl.BlockSpec(shape, lambda i: (0, 0))
    dist = pl.pallas_call(
        _siamese_main_kernel,
        out_shape=jax.ShapeDtypeStruct((1, B_pad), jnp.float32),
        grid=(num_tiles,),
        in_specs=[pl.BlockSpec((TB, F_in), lambda i: (i, 0)),
                  pl.BlockSpec((TB, F_in), lambda i: (i, 0)),
                  resident((F_in, F1)), resident((4, F1)),
                  resident((F1, F2)), resident((1, F2))],
        out_specs=pl.BlockSpec((1, TB), lambda i: (0, i)),
        compiler_params=pltpu.CompilerParams(
            dimension_semantics=("parallel",),
            vmem_limit_bytes=vmem_limit),
    )(A_p, X_p, w1, scale_shift, w2, b2)

    return dist[0, :B]


# ----------------------------------- test harness -----------------------------------
def init_params(key):
    k1, k2, k3, k4, k5, k6 = jax.random.split(key, 6)
    w1 = jax.random.normal(k1, (IN_FEATURES, INTERM[0]), jnp.float32) * 0.1
    b1 = jax.random.normal(k2, (1, INTERM[0]), jnp.float32) * 0.05
    gamma = 1.0 + 0.1 * jax.random.normal(k5, (1, INTERM[0]), jnp.float32)
    beta = 0.05 * jax.random.normal(k6, (1, INTERM[0]), jnp.float32)
    w2 = jax.random.normal(k3, (INTERM[0], INTERM[1]), jnp.float32) * 0.1
    b2 = jax.random.normal(k4, (1, INTERM[1]), jnp.float32) * 0.05
    return (w1, b1, gamma, beta, w2, b2)


def _reference_encode(x, w1, b1, gamma, beta, w2, b2):
    hp = lax.Precision.HIGHEST
    h = jnp.dot(x, w1, precision=hp) + b1
    mean = jnp.mean(h, axis=0, keepdims=True)
    var = jnp.mean((h - mean) * (h - mean), axis=0, keepdims=True)   # biased variance
    h = (h - mean) * lax.rsqrt(var + BN_EPS) * gamma + beta
    h = _leaky_relu(h)
    h = jnp.dot(h, w2, precision=hp) + b2
    return _leaky_relu(h)


def reference_forward(A, X, params):
    diff = _reference_encode(A, *params) - _reference_encode(X, *params) + PD_EPS
    return jnp.sqrt(jnp.sum(diff * diff, axis=-1))


if __name__ == "__main__":
    key = jax.random.PRNGKey(0)
    kp, ka, kx, kb, kc = jax.random.split(key, 5)

    params = init_params(kp)

    # Case 1: small batch -> fused single-kernel path.
    B = 8
    A = jax.random.normal(ka, (B, IN_FEATURES), jnp.float32)
    X = jax.random.normal(kx, (B, IN_FEATURES), jnp.float32)
    dist = jax.block_until_ready(siamese_forward(A, X, params))
    ref = reference_forward(A, X, params)
    assert dist.shape == (B,)
    assert jnp.allclose(dist, ref, atol=5e-4, rtol=5e-4), (dist, ref)

    # Case 2: medium batch, still fused (padding to multiple of 8 + exact BN).
    B2 = 130
    A2 = jax.random.normal(kb, (B2, IN_FEATURES), jnp.float32)
    X2 = jax.random.normal(jax.random.fold_in(kb, 1), (B2, IN_FEATURES), jnp.float32)
    dist2 = jax.block_until_ready(siamese_forward(A2, X2, params))
    ref2 = reference_forward(A2, X2, params)
    assert dist2.shape == (B2,)
    assert jnp.allclose(dist2, ref2, atol=5e-4, rtol=5e-4), (dist2, ref2)

    # Case 3: force the tiled two-pass path (cross-tile Chan statistics, 2-core split,
    # padded last tile, parallel main pass). TB=128, 2 tiles, B padded 130 -> 256.
    dist3 = jax.block_until_ready(
        siamese_forward(A2, X2, params, max_batch_tile=128, force_tiled=True))
    assert dist3.shape == (B2,)
    assert jnp.allclose(dist3, ref2, atol=5e-4, rtol=5e-4), (dist3, ref2)

    # Case 4: tiled path with multiple tiles per core (4 tiles, uneven core loads).
    B3 = 300
    A3 = jax.random.normal(kc, (B3, IN_FEATURES), jnp.float32)
    X3 = jax.random.normal(jax.random.fold_in(kc, 1), (B3, IN_FEATURES), jnp.float32)
    dist4 = jax.block_until_ready(
        siamese_forward(A3, X3, params, max_batch_tile=128, force_tiled=True))
    ref4 = reference_forward(A3, X3, params)
    assert dist4.shape == (B3,)
    assert jnp.allclose(dist4, ref4, atol=5e-4, rtol=5e-4), (dist4, ref4)

    print("KERNEL_OK")
</pallas_src>

<mosaic_0001>
module attributes {stable_mosaic.version = 11 : i64} {
  func.func @_fused_kernel(%arg0: i32, %arg1: memref<8x64xf32, #tpu.memory_space<vmem>>, %arg2: memref<8x64xf32, #tpu.memory_space<vmem>>, %arg3: memref<64x64xf32, #tpu.memory_space<vmem>>, %arg4: memref<1x64xf32, #tpu.memory_space<vmem>>, %arg5: memref<1x64xf32, #tpu.memory_space<vmem>>, %arg6: memref<64x32xf32, #tpu.memory_space<vmem>>, %arg7: memref<1x32xf32, #tpu.memory_space<vmem>>, %arg8: memref<1x8xf32, #tpu.memory_space<vmem>>) attributes {dimension_semantics = [#tpu.dimension_semantics<arbitrary>], iteration_bounds = array<i64: 1>, scalar_prefetch = 0 : i64, scratch_operands = 0 : i64, tpu.core_type = #tpu.core_type<tc>, window_params = [{pipeline_mode = #tpu.pipeline_mode<synchronous>, transform_indices = @transform_0, window_bounds = array<i64: 8, 64>}, {pipeline_mode = #tpu.pipeline_mode<synchronous>, transform_indices = @transform_1, window_bounds = array<i64: 8, 64>}, {pipeline_mode = #tpu.pipeline_mode<synchronous>, transform_indices = @transform_2, window_bounds = array<i64: 64, 64>}, {pipeline_mode = #tpu.pipeline_mode<synchronous>, transform_indices = @transform_3, window_bounds = array<i64: 1, 64>}, {pipeline_mode = #tpu.pipeline_mode<synchronous>, transform_indices = @transform_4, window_bounds = array<i64: 1, 64>}, {pipeline_mode = #tpu.pipeline_mode<synchronous>, transform_indices = @transform_5, window_bounds = array<i64: 64, 32>}, {pipeline_mode = #tpu.pipeline_mode<synchronous>, transform_indices = @transform_6, window_bounds = array<i64: 1, 32>}, {pipeline_mode = #tpu.pipeline_mode<synchronous>, transform_indices = @transform_7, window_bounds = array<i64: 1, 8>}]} {
    %c0 = arith.constant 0 : index
    %c0_0 = arith.constant 0 : index
    %0 = vector.load %arg4[%c0, %c0_0] : memref<1x64xf32, #tpu.memory_space<vmem>>, vector<1x64xf32>
    %c0_1 = arith.constant 0 : index
    %c0_2 = arith.constant 0 : index
    %1 = vector.load %arg5[%c0_1, %c0_2] : memref<1x64xf32, #tpu.memory_space<vmem>>, vector<1x64xf32>
    %c0_3 = arith.constant 0 : index
    %c0_4 = arith.constant 0 : index
    %2 = vector.load %arg3[%c0_3, %c0_4] : memref<64x64xf32, #tpu.memory_space<vmem>>, vector<64x64xf32>
    %c0_5 = arith.constant 0 : index
    %c0_6 = arith.constant 0 : index
    %3 = vector.load %arg6[%c0_5, %c0_6] : memref<64x32xf32, #tpu.memory_space<vmem>>, vector<64x32xf32>
    %c0_7 = arith.constant 0 : index
    %c0_8 = arith.constant 0 : index
    %4 = vector.load %arg7[%c0_7, %c0_8] : memref<1x32xf32, #tpu.memory_space<vmem>>, vector<1x32xf32>
    %c0_9 = arith.constant 0 : index
    %c0_10 = arith.constant 0 : index
    %5 = vector.load %arg1[%c0_9, %c0_10] : memref<8x64xf32, #tpu.memory_space<vmem>>, vector<8x64xf32>
    %cst = arith.constant dense<0.000000e+00> : vector<8x64xf32>
    %6 = tpu.matmul %5, %2, %cst {dimension_numbers = #tpu.dot_dimension_numbers<[1], [0], [0], [1], [0, 0, 1, 1], [], []>} : vector<8x64xf32>, vector<64x64xf32>, vector<8x64xf32> -> vector<8x64xf32>
    %cst_11 = arith.constant dense<0.000000e+00> : vector<64xf32>
    %7 = vector.multi_reduction <add>, %6, %cst_11 [0] : vector<8x64xf32> to vector<64xf32>
    %8 = vector.shape_cast %7 : vector<64xf32> to vector<1x64xf32>
    %cst_12 = arith.constant 1.250000e-01 : f32
    %9 = vector.broadcast %cst_12 : f32 to vector<1x64xf32>
    %10 = arith.mulf %8, %9 : vector<1x64xf32>
    %11 = vector.broadcast %10 : vector<1x64xf32> to vector<8x64xf32>
    %12 = arith.subf %6, %11 : vector<8x64xf32>
    %13 = arith.mulf %12, %12 : vector<8x64xf32>
    %cst_13 = arith.constant dense<0.000000e+00> : vector<64xf32>
    %14 = vector.multi_reduction <add>, %13, %cst_13 [0] : vector<8x64xf32> to vector<64xf32>
    %15 = vector.shape_cast %14 : vector<64xf32> to vector<1x64xf32>
    %cst_14 = arith.constant 0.000000e+00 : f32
    %16 = vector.broadcast %cst_14 : f32 to vector<1x64xf32>
    %17 = arith.mulf %16, %10 : vector<1x64xf32>
    %18 = arith.mulf %17, %10 : vector<1x64xf32>
    %19 = arith.subf %15, %18 : vector<1x64xf32>
    %cst_15 = arith.constant 1.250000e-01 : f32
    %20 = vector.broadcast %cst_15 : f32 to vector<1x64xf32>
    %21 = arith.mulf %19, %20 : vector<1x64xf32>
    %cst_16 = arith.constant 0.000000e+00 : f32
    %22 = vector.broadcast %cst_16 : f32 to vector<1x64xf32>
    %23 = arith.maximumf %21, %22 : vector<1x64xf32>
    %cst_17 = arith.constant 9.99999974E-6 : f32
    %24 = vector.broadcast %cst_17 : f32 to vector<1x64xf32>
    %25 = arith.addf %23, %24 : vector<1x64xf32>
    %26 = math.rsqrt %25 : vector<1x64xf32>
    %27 = arith.mulf %0, %26 : vector<1x64xf32>
    %28 = arith.mulf %10, %27 : vector<1x64xf32>
    %29 = arith.subf %1, %28 : vector<1x64xf32>
    %30 = vector.broadcast %27 : vector<1x64xf32> to vector<8x64xf32>
    %31 = arith.mulf %6, %30 : vector<8x64xf32>
    %32 = vector.broadcast %29 : vector<1x64xf32> to vector<8x64xf32>
    %33 = arith.addf %31, %32 : vector<8x64xf32>
    %cst_18 = arith.constant 0.000000e+00 : f32
    %34 = vector.broadcast %cst_18 : f32 to vector<8x64xf32>
    %35 = arith.cmpf oge, %33, %34 : vector<8x64xf32>
    %cst_19 = arith.constant 0.00999999977 : f32
    %36 = vector.broadcast %cst_19 : f32 to vector<8x64xf32>
    %37 = arith.mulf %36, %33 : vector<8x64xf32>
    %38 = arith.select %35, %33, %37 : vector<8x64xi1>, vector<8x64xf32>
    %cst_20 = arith.constant dense<0.000000e+00> : vector<8x32xf32>
    %39 = tpu.matmul %38, %3, %cst_20 {dimension_numbers = #tpu.dot_dimension_numbers<[1], [0], [0], [1], [0, 0, 1, 1], [], []>} : vector<8x64xf32>, vector<64x32xf32>, vector<8x32xf32> -> vector<8x32xf32>
    %40 = vector.broadcast %4 : vector<1x32xf32> to vector<8x32xf32>
    %41 = arith.addf %39, %40 : vector<8x32xf32>
    %cst_21 = arith.constant 0.000000e+00 : f32
    %42 = vector.broadcast %cst_21 : f32 to vector<8x32xf32>
    %43 = arith.cmpf oge, %41, %42 : vector<8x32xf32>
    %cst_22 = arith.constant 0.00999999977 : f32
    %44 = vector.broadcast %cst_22 : f32 to vector<8x32xf32>
    %45 = arith.mulf %44, %41 : vector<8x32xf32>
    %46 = arith.select %43, %41, %45 : vector<8x32xi1>, vector<8x32xf32>
    %c0_23 = arith.constant 0 : index
    %c0_24 = arith.constant 0 : index
    %47 = vector.load %arg2[%c0_23, %c0_24] : memref<8x64xf32, #tpu.memory_space<vmem>>, vector<8x64xf32>
    %cst_25 = arith.constant dense<0.000000e+00> : vector<8x64xf32>
    %48 = tpu.matmul %47, %2, %cst_25 {dimension_numbers = #tpu.dot_dimension_numbers<[1], [0], [0], [1], [0, 0, 1, 1], [], []>} : vector<8x64xf32>, vector<64x64xf32>, vector<8x64xf32> -> vector<8x64xf32>
    %cst_26 = arith.constant dense<0.000000e+00> : vector<64xf32>
    %49 = vector.multi_reduction <add>, %48, %cst_26 [0] : vector<8x64xf32> to vector<64xf32>
    %50 = vector.shape_cast %49 : vector<64xf32> to vector<1x64xf32>
    %cst_27 = arith.constant 1.250000e-01 : f32
    %51 = vector.broadcast %cst_27 : f32 to vector<1x64xf32>
    %52 = arith.mulf %50, %51 : vector<1x64xf32>
    %53 = vector.broadcast %52 : vector<1x64xf32> to vector<8x64xf32>
    %54 = arith.subf %48, %53 : vector<8x64xf32>
    %55 = arith.mulf %54, %54 : vector<8x64xf32>
    %cst_28 = arith.constant dense<0.000000e+00> : vector<64xf32>
    %56 = vector.multi_reduction <add>, %55, %cst_28 [0] : vector<8x64xf32> to vector<64xf32>
    %57 = vector.shape_cast %56 : vector<64xf32> to vector<1x64xf32>
    %cst_29 = arith.constant 0.000000e+00 : f32
    %58 = vector.broadcast %cst_29 : f32 to vector<1x64xf32>
    %59 = arith.mulf %58, %52 : vector<1x64xf32>
    %60 = arith.mulf %59, %52 : vector<1x64xf32>
    %61 = arith.subf %57, %60 : vector<1x64xf32>
    %cst_30 = arith.constant 1.250000e-01 : f32
    %62 = vector.broadcast %cst_30 : f32 to vector<1x64xf32>
    %63 = arith.mulf %61, %62 : vector<1x64xf32>
    %cst_31 = arith.constant 0.000000e+00 : f32
    %64 = vector.broadcast %cst_31 : f32 to vector<1x64xf32>
    %65 = arith.maximumf %63, %64 : vector<1x64xf32>
    %cst_32 = arith.constant 9.99999974E-6 : f32
    %66 = vector.broadcast %cst_32 : f32 to vector<1x64xf32>
    %67 = arith.addf %65, %66 : vector<1x64xf32>
    %68 = math.rsqrt %67 : vector<1x64xf32>
    %69 = arith.mulf %0, %68 : vector<1x64xf32>
    %70 = arith.mulf %52, %69 : vector<1x64xf32>
    %71 = arith.subf %1, %70 : vector<1x64xf32>
    %72 = vector.broadcast %69 : vector<1x64xf32> to vector<8x64xf32>
    %73 = arith.mulf %48, %72 : vector<8x64xf32>
    %74 = vector.broadcast %71 : vector<1x64xf32> to vector<8x64xf32>
    %75 = arith.addf %73, %74 : vector<8x64xf32>
    %cst_33 = arith.constant 0.000000e+00 : f32
    %76 = vector.broadcast %cst_33 : f32 to vector<8x64xf32>
    %77 = arith.cmpf oge, %75, %76 : vector<8x64xf32>
    %cst_34 = arith.constant 0.00999999977 : f32
    %78 = vector.broadcast %cst_34 : f32 to vector<8x64xf32>
    %79 = arith.mulf %78, %75 : vector<8x64xf32>
    %80 = arith.select %77, %75, %79 : vector<8x64xi1>, vector<8x64xf32>
    %cst_35 = arith.constant dense<0.000000e+00> : vector<8x32xf32>
    %81 = tpu.matmul %80, %3, %cst_35 {dimension_numbers = #tpu.dot_dimension_numbers<[1], [0], [0], [1], [0, 0, 1, 1], [], []>} : vector<8x64xf32>, vector<64x32xf32>, vector<8x32xf32> -> vector<8x32xf32>
    %82 = vector.broadcast %4 : vector<1x32xf32> to vector<8x32xf32>
    %83 = arith.addf %81, %82 : vector<8x32xf32>
    %cst_36 = arith.constant 0.000000e+00 : f32
    %84 = vector.broadcast %cst_36 : f32 to vector<8x32xf32>
    %85 = arith.cmpf oge, %83, %84 : vector<8x32xf32>
    %cst_37 = arith.constant 0.00999999977 : f32
    %86 = vector.broadcast %cst_37 : f32 to vector<8x32xf32>
    %87 = arith.mulf %86, %83 : vector<8x32xf32>
    %88 = arith.select %85, %83, %87 : vector<8x32xi1>, vector<8x32xf32>
    %89 = arith.subf %46, %88 : vector<8x32xf32>
    %cst_38 = arith.constant 9.99999997E-7 : f32
    %90 = vector.broadcast %cst_38 : f32 to vector<8x32xf32>
    %91 = arith.addf %89, %90 : vector<8x32xf32>
    %92 = arith.mulf %91, %91 : vector<8x32xf32>
    %cst_39 = arith.constant dense<0.000000e+00> : vector<8xf32>
    %93 = vector.multi_reduction <add>, %92, %cst_39 [1] : vector<8x32xf32> to vector<8xf32>
    %94 = vector.shape_cast %93 : vector<8xf32> to vector<8x1xf32>
    %95 = tpu.transpose %94, [1, 0] : vector<8x1xf32> -> vector<1x8xf32>
    %96 = math.sqrt %95 : vector<1x8xf32>
    %c0_40 = arith.constant 0 : index
    %c0_41 = arith.constant 0 : index
    %97 = vector.load %arg8[%c0_40, %c0_41] : memref<1x8xf32, #tpu.memory_space<vmem>>, vector<1x8xf32>
    tpu.vector_store %arg8[%c0_40, %c0_41], %96 {strides = array<i32>} : memref<1x8xf32, #tpu.memory_space<vmem>>, vector<1x8xf32>,
    return
  }
  func.func @transform_0(%arg0: i32) -> (i32, i32) {
    %c0_i32 = arith.constant 0 : i32
    %c0_i32_0 = arith.constant 0 : i32
    %c0_i32_1 = arith.constant 0 : i32
    return %c0_i32, %c0_i32_0 : i32, i32
  }
  func.func @transform_1(%arg0: i32) -> (i32, i32) {
    %c0_i32 = arith.constant 0 : i32
    %c0_i32_0 = arith.constant 0 : i32
    %c0_i32_1 = arith.constant 0 : i32
    return %c0_i32, %c0_i32_0 : i32, i32
  }
  func.func @transform_2(%arg0: i32) -> (i32, i32) {
    %c0_i32 = arith.constant 0 : i32
    %c0_i32_0 = arith.constant 0 : i32
    %c0_i32_1 = arith.constant 0 : i32
    return %c0_i32, %c0_i32_0 : i32, i32
  }
  func.func @transform_3(%arg0: i32) -> (i32, i32) {
    %c0_i32 = arith.constant 0 : i32
    %c0_i32_0 = arith.constant 0 : i32
    %c0_i32_1 = arith.constant 0 : i32
    return %c0_i32, %c0_i32_0 : i32, i32
  }
  func.func @transform_4(%arg0: i32) -> (i32, i32) {
    %c0_i32 = arith.constant 0 : i32
    %c0_i32_0 = arith.constant 0 : i32
    %c0_i32_1 = arith.constant 0 : i32
    return %c0_i32, %c0_i32_0 : i32, i32
  }
  func.func @transform_5(%arg0: i32) -> (i32, i32) {
    %c0_i32 = arith.constant 0 : i32
    %c0_i32_0 = arith.constant 0 : i32
    %c0_i32_1 = arith.constant 0 : i32
    return %c0_i32, %c0_i32_0 : i32, i32
  }
  func.func @transform_6(%arg0: i32) -> (i32, i32) {
    %c0_i32 = arith.constant 0 : i32
    %c0_i32_0 = arith.constant 0 : i32
    %c0_i32_1 = arith.constant 0 : i32
    return %c0_i32, %c0_i32_0 : i32, i32
  }
  func.func @transform_7(%arg0: i32) -> (i32, i32) {
    %c0_i32 = arith.constant 0 : i32
    %c0_i32_0 = arith.constant 0 : i32
    %c0_i32_1 = arith.constant 0 : i32
    return %c0_i32, %c0_i32_0 : i32, i32
  }
}

</mosaic_0001>

<llo_original>
// kernel: tpu_custom_call.1
$region0: #{tpu_custom_call.1}
  #allocation0 [shape = 'u32[]', space=smem, size = 0x4, offset = 0x4, fixed_abs, tag = 'smem constant byte address 0x4 - core index']
  #allocation1 [shape = 'u32[72,128]{1,0:T(1,128)}', space=vmem, size = 0x9000, scoped, tag = 'internal scratch']
  %s0 = inlined_call_operand.vmem [shape: f32[8,64], index: 0, kind: input, shape index: {}]
  %s1 = inlined_call_operand.vmem [shape: f32[8,64], index: 1, kind: input, shape index: {}]
  %s2 = inlined_call_operand.vmem [shape: f32[64,64], index: 2, kind: input, shape index: {}]
  %s3 = inlined_call_operand.vmem [shape: f32[1,64], index: 3, kind: input, shape index: {}]
  %s4 = inlined_call_operand.vmem [shape: f32[1,64], index: 4, kind: input, shape index: {}]
  %s5 = inlined_call_operand.vmem [shape: f32[64,32], index: 5, kind: input, shape index: {}]
  %s6 = inlined_call_operand.vmem [shape: f32[1,32], index: 6, kind: input, shape index: {}]
  %s7 = inlined_call_operand.hbm [shape: f32[1,8], index: 7, kind: output, shape index: {}]
  %s8 = sld [smem:[#allocation0]]
  $region38: #{tpu_custom_call.1} parent=0
    _
  %s10 = ssub.s32 1, %s8
  %s11 = scalar_select 0, %s10, %s8
  $region1: #{tpu_custom_call.1} parent=0
    #allocation2 [shape = 'u8[512]{0}', space=vmem, size = 0x400, scoped, tag = 'output window, operand 0, single buffered']
    #allocation3 [shape = 's32[1]{0}', space=sflag, size = 0x4, scoped, tag = 'scoped memory for tpu_custom_call.1']
    %12 = vsyncpa [#allocation3], 0
    // Predicated region
    $region2: #{tpu_custom_call.1} parent=1 // pred_check
      _
    $region3: #{tpu_custom_call.1} parent=1 // pred_check_branch
      %14 = sbr.rel (0) target = $region5
    $region4: #{tpu_custom_call.1} parent=1 // pred_region
      _
    $region5: #{tpu_custom_call.1} parent=1 // pred_fallthru
      _
    // Predicated region
    $region6: #{tpu_custom_call.1} parent=1 // pred_check
      _
    $region7: #{tpu_custom_call.1} parent=1 // pred_check_branch
      %16 = sbr.rel (0) target = $region9
    $region8: #{tpu_custom_call.1} parent=1 // pred_region
      _
    $region9: #{tpu_custom_call.1} parent=1 // pred_fallthru
      _
    // Predicated region
    $region10: #{tpu_custom_call.1} parent=1 // pred_check
      _
    $region11: #{tpu_custom_call.1} parent=1 // pred_check_branch
      %18 = sbr.rel (0) target = $region13
    $region12: #{tpu_custom_call.1} parent=1 // pred_region
      _
    $region13: #{tpu_custom_call.1} parent=1 // pred_fallthru
      _
    // Predicated region
    $region14: #{tpu_custom_call.1} parent=1 // pred_check
      _
    $region15: #{tpu_custom_call.1} parent=1 // pred_check_branch
      %20 = sbr.rel (0) target = $region17
    $region16: #{tpu_custom_call.1} parent=1 // pred_region
      _
    $region17: #{tpu_custom_call.1} parent=1 // pred_fallthru
      _
    // Predicated region
    $region18: #{tpu_custom_call.1} parent=1 // pred_check
      _
    $region19: #{tpu_custom_call.1} parent=1 // pred_check_branch
      %22 = sbr.rel (0) target = $region21
    $region20: #{tpu_custom_call.1} parent=1 // pred_region
      _
    $region21: #{tpu_custom_call.1} parent=1 // pred_fallthru
      _
    // Predicated region
    $region22: #{tpu_custom_call.1} parent=1 // pred_check
      _
    $region23: #{tpu_custom_call.1} parent=1 // pred_check_branch
      %24 = sbr.rel (0) target = $region25
    $region24: #{tpu_custom_call.1} parent=1 // pred_region
      _
    $region25: #{tpu_custom_call.1} parent=1 // pred_fallthru
      _
    // Predicated region
    $region26: #{tpu_custom_call.1} parent=1 // pred_check
      _
    $region27: #{tpu_custom_call.1} parent=1 // pred_check_branch
      %26 = sbr.rel (0) target = $region29
    $region28: #{tpu_custom_call.1} parent=1 // pred_region
      _
    $region29: #{tpu_custom_call.1} parent=1 // pred_fallthru
      _
    %v27 = vld [vmem:[%s3] sm:$0x1]
    %v28 = vld [vmem:[%s4] sm:$0x1]
    %v29 = vld [vmem:[%s2] sm:$0xff]
    %v30 = vld [vmem:[%s2 + $0x8] sm:$0xff]
    %v31 = vld [vmem:[%s2 + $0x10] sm:$0xff]
    %v32 = vld [vmem:[%s2 + $0x18] sm:$0xff]
    %v33 = vld [vmem:[%s2 + $0x20] sm:$0xff]
    %v34 = vld [vmem:[%s2 + $0x28] sm:$0xff]
    %v35 = vld [vmem:[%s2 + $0x30] sm:$0xff]
    %v36 = vld [vmem:[%s2 + $0x38] sm:$0xff]
    %v37 = vld [vmem:[%s5] sm:$0xff]
    %v38 = vld [vmem:[%s5 + $0x8] sm:$0xff]
    %v39 = vld [vmem:[%s5 + $0x10] sm:$0xff]
    %v40 = vld [vmem:[%s5 + $0x18] sm:$0xff]
    %v41 = vld [vmem:[%s5 + $0x20] sm:$0xff]
    %v42 = vld [vmem:[%s5 + $0x28] sm:$0xff]
    %v43 = vld [vmem:[%s5 + $0x30] sm:$0xff]
    %v44 = vld [vmem:[%s5 + $0x38] sm:$0xff]
    %v45 = vld [vmem:[%s6] sm:$0x1]
    %v46 = vld [vmem:[%s0] sm:$0xff]
    %vm47 = vcmask 523264
    %v49 = vsel %vm47, %v46, 0
    %51 = vmatpush.msra.mxu0 0.0
    %52 = vmatpush.msra.mxu0 0.0
    %53 = vmatpush.msra.mxu0 0.0
    %54 = vmatpush.msra.mxu0 0.0
    %55 = vmatpush.msra.mxu0 0.0
    %56 = vmatpush.msra.mxu0 0.0
    %57 = vmatpush.msra.mxu0 0.0
    %58 = vmatpush.msra.mxu0 0.0
    %59 = vmatpush.msra.mxu0 %v36
    %60 = vmatpush.msra.mxu0 %v35
    %61 = vmatpush.msra.mxu0 %v34
    %62 = vmatpush.msra.mxu0 %v33
    %63 = vmatpush.msra.mxu0 %v32
    %64 = vmatpush.msra.mxu0 %v31
    %65 = vmatpush.msra.mxu0 %v30
    %66 = vmatpush.msra.mxu0 %v29
    %67 = vmatmul.f32.gmra.mxu0 %v49
    %v68 = vpop.f32.mrf.mxu0
    %v69 = vadd.f32 0.0, %v68
    %70 = vdwg.mxu0
    %v71 = vsel %vm47, %v69, 0.0
    %v72 = vrot.slane %v71, 4
    %v73 = vadd.f32 %v71, %v72
    %v74 = vrot.slane %v73, 2
    %v75 = vadd.f32 %v73, %v74
    %v76 = vrot.slane %v75, 1
    %v77 = vadd.f32 %v75, %v76
    %v78 = vmul.f32 %v77, 0.125
    %v79 = vsub.f32 %v69, %v78
    %v80 = vmul.f32 %v79, %v79
    %v81 = vsel %vm47, %v80, 0.0
    %v82 = vrot.slane %v81, 4
    %v83 = vadd.f32 %v81, %v82
    %v84 = vrot.slane %v83, 2
    %v85 = vadd.f32 %v83, %v84
    %v86 = vrot.slane %v85, 1
    %v87 = vadd.f32 %v85, %v86
    %v88 = vmul.f32 %v78, 0.0
    %v89 = vmul.f32 %v88, %v78
    %v90 = vsub.f32 %v87, %v89
    %v91 = vmul.f32 %v90, 0.125
    %v92 = vmax.f32 %v91, 0.0
    %v93 = vadd.f32 %v92, 1e-05
    %v94 = vrsqrt.pop %v93
    %v95 = vmul.f32 %v94, %v93
    %v96 = vmul.f32 %v95, %v94
    %v97 = vmul.f32 0.5, %v96
    %v98 = vsub.f32 1.5, %v97
    %v99 = vmul.f32 %v94, %v98
    %vm100 = vweird.f32 %v93
    %vm101 = vweird.f32 %v94
    %vm102 = vmor %vm100, %vm101
    %v103 = vsel %vm102, %v94, %v99
    %v104 = vmul.f32 %v27, %v103
    %v105 = vmul.f32 %v78, %v104
    %v106 = vsub.f32 %v28, %v105
    %v108 = vperm.slane %v104, 0
    %v110 = vmul.f32 %v69, %v108
    %v112 = vperm.slane %v106, 0
    %v114 = vadd.f32 %v110, %v112
    %vm115 = vcmp.ge.f32.partialorder %v114, 0.0
    %v116 = vmul.f32 %v114, 0.01
    %v117 = vsel %vm115, %v114, %v116
    %v119 = vperm.slane %v45, 0
    %v122 = vsel %vm47, %v117, 0
    %124 = vmatpush.msra.mxu0 0.0
    %125 = vmatpush.msra.mxu0 0.0
    %126 = vmatpush.msra.mxu0 0.0
    %127 = vmatpush.msra.mxu0 0.0
    %128 = vmatpush.msra.mxu0 0.0
    %129 = vmatpush.msra.mxu0 0.0
    %130 = vmatpush.msra.mxu0 0.0
    %131 = vmatpush.msra.mxu0 0.0
    %132 = vmatpush.msra.mxu0 %v44
    %133 = vmatpush.msra.mxu0 %v43
    %134 = vmatpush.msra.mxu0 %v42
    %135 = vmatpush.msra.mxu0 %v41
    %136 = vmatpush.msra.mxu0 %v40
    %137 = vmatpush.msra.mxu0 %v39
    %138 = vmatpush.msra.mxu0 %v38
    %139 = vmatpush.msra.mxu0 %v37
    %140 = vmatmul.f32.gmra.mxu0 %v122
    %v141 = vpop.f32.mrf.mxu0
    %v142 = vadd.f32 %v119, %v141
    %143 = vdwg.mxu0
    %vm144 = vcmp.ge.f32.partialorder %v142, 0.0
    %v145 = vmul.f32 %v142, 0.01
    %v146 = vsel %vm144, %v142, %v145
    %v147 = vld [vmem:[%s1] sm:$0xff]
    %v149 = vsel %vm47, %v147, 0
    %151 = vmatpush.msra.mxu0 0.0
    %152 = vmatpush.msra.mxu0 0.0
    %153 = vmatpush.msra.mxu0 0.0
    %154 = vmatpush.msra.mxu0 0.0
    %155 = vmatpush.msra.mxu0 0.0
    %156 = vmatpush.msra.mxu0 0.0
    %157 = vmatpush.msra.mxu0 0.0
    %158 = vmatpush.msra.mxu0 0.0
    %159 = vmatpush.msra.mxu0 %v36
    %160 = vmatpush.msra.mxu0 %v35
    %161 = vmatpush.msra.mxu0 %v34
    %162 = vmatpush.msra.mxu0 %v33
    %163 = vmatpush.msra.mxu0 %v32
    %164 = vmatpush.msra.mxu0 %v31
    %165 = vmatpush.msra.mxu0 %v30
    %166 = vmatpush.msra.mxu0 %v29
    %167 = vmatmul.f32.gmra.mxu0 %v149
    %v168 = vpop.f32.mrf.mxu0
    %v169 = vadd.f32 0.0, %v168
    %170 = vdwg.mxu0
    %v171 = vsel %vm47, %v169, 0.0
    %v172 = vrot.slane %v171, 4
    %v173 = vadd.f32 %v171, %v172
    %v174 = vrot.slane %v173, 2
    %v175 = vadd.f32 %v173, %v174
    %v176 = vrot.slane %v175, 1
    %v177 = vadd.f32 %v175, %v176
    %v178 = vmul.f32 %v177, 0.125
    %v179 = vsub.f32 %v169, %v178
    %v180 = vmul.f32 %v179, %v179
    %v181 = vsel %vm47, %v180, 0.0
    %v182 = vrot.slane %v181, 4
    %v183 = vadd.f32 %v181, %v182
    %v184 = vrot.slane %v183, 2
    %v185 = vadd.f32 %v183, %v184
    %v186 = vrot.slane %v185, 1
    %v187 = vadd.f32 %v185, %v186
    %v188 = vmul.f32 %v178, 0.0
    %v189 = vmul.f32 %v188, %v178
    %v190 = vsub.f32 %v187, %v189
    %v191 = vmul.f32 %v190, 0.125
    %v192 = vmax.f32 %v191, 0.0
    %v193 = vadd.f32 %v192, 1e-05
    %v194 = vrsqrt.pop %v193
    %v195 = vmul.f32 %v194, %v193
    %v196 = vmul.f32 %v195, %v194
    %v197 = vmul.f32 0.5, %v196
    %v198 = vsub.f32 1.5, %v197
    %v199 = vmul.f32 %v194, %v198
    %vm200 = vweird.f32 %v193
    %vm201 = vweird.f32 %v194
    %vm202 = vmor %vm200, %vm201
    %v203 = vsel %vm202, %v194, %v199
    %v204 = vmul.f32 %v27, %v203
    %v205 = vmul.f32 %v178, %v204
    %v206 = vsub.f32 %v28, %v205
    %v208 = vperm.slane %v204, 0
    %v210 = vmul.f32 %v169, %v208
    %v212 = vperm.slane %v206, 0
    %v214 = vadd.f32 %v210, %v212
    %vm215 = vcmp.ge.f32.partialorder %v214, 0.0
    %v216 = vmul.f32 %v214, 0.01
    %v217 = vsel %vm215, %v214, %v216
    %v219 = vsel %vm47, %v217, 0
    %221 = vmatpush.msra.mxu0 0.0
    %222 = vmatpush.msra.mxu0 0.0
    %223 = vmatpush.msra.mxu0 0.0
    %224 = vmatpush.msra.mxu0 0.0
    %225 = vmatpush.msra.mxu0 0.0
    %226 = vmatpush.msra.mxu0 0.0
    %227 = vmatpush.msra.mxu0 0.0
    %228 = vmatpush.msra.mxu0 0.0
    %229 = vmatpush.msra.mxu0 %v44
    %230 = vmatpush.msra.mxu0 %v43
    %231 = vmatpush.msra.mxu0 %v42
    %232 = vmatpush.msra.mxu0 %v41
    %233 = vmatpush.msra.mxu0 %v40
    %234 = vmatpush.msra.mxu0 %v39
    %235 = vmatpush.msra.mxu0 %v38
    %236 = vmatpush.msra.mxu0 %v37
    %237 = vmatmul.f32.gmra.mxu0 %v219
    %v238 = vpop.f32.mrf.mxu0
    %v239 = vadd.f32 %v119, %v238
    %240 = vdwg.mxu0
    %vm241 = vcmp.ge.f32.partialorder %v239, 0.0
    %v242 = vmul.f32 %v239, 0.01
    %v243 = vsel %vm241, %v239, %v242
    %v244 = vsub.f32 %v146, %v243
    %v245 = vadd.f32 %v244, 1e-06
    %v246 = vmul.f32 %v245, %v245
    %vm247 = vcmask 261120
    %v248 = vsel %vm247, %v246, 0.0
    %249 = vadd.xlane.f32.xlu0 %v248
    %v250 = vpop.xlane.xlu0 %249
    %251 = vxpose.xlu0.b32.start [1/16] %v250, 128
    %252 = vxpose.xlu0.b32.cont [2/16] 0.0, 128
    %253 = vxpose.xlu0.b32.cont [3/16] 0.0, 128
    %254 = vxpose.xlu0.b32.cont [4/16] 0.0, 128
    %255 = vxpose.xlu0.b32.cont [5/16] 0.0, 128
    %256 = vxpose.xlu0.b32.cont [6/16] 0.0, 128
    %257 = vxpose.xlu0.b32.cont [7/16] 0.0, 128
    %258 = vxpose.xlu0.b32.cont [8/16] 0.0, 128
    %259 = vxpose.xlu0.b32.cont [9/16] 0.0, 128
    %260 = vxpose.xlu0.b32.cont [10/16] 0.0, 128
    %261 = vxpose.xlu0.b32.cont [11/16] 0.0, 128
    %262 = vxpose.xlu0.b32.cont [12/16] 0.0, 128
    %263 = vxpose.xlu0.b32.cont [13/16] 0.0, 128
    %264 = vxpose.xlu0.b32.cont [14/16] 0.0, 128
    %265 = vxpose.xlu0.b32.cont [15/16] 0.0, 128
    %266 = vxpose.xlu0.b32.end [16/16] 0.0, 128
    %v267 = vpop.trf.xlu0
    %v268 = vpop.trf.xlu0
    %v269 = vpop.trf.xlu0
    %v270 = vpop.trf.xlu0
    %v271 = vpop.trf.xlu0
    %v272 = vpop.trf.xlu0
    %v273 = vpop.trf.xlu0
    %v274 = vpop.trf.xlu0
    %v275 = vpop.trf.xlu0
    %v276 = vpop.trf.xlu0
    %v277 = vpop.trf.xlu0
    %v278 = vpop.trf.xlu0
    %v279 = vpop.trf.xlu0
    %v280 = vpop.trf.xlu0
    %v281 = vpop.trf.xlu0
    %v282 = vpop.trf.xlu0
    %v283 = vrsqrt.pop %v267
    %v284 = vmul.f32 %v283, %v267
    %v285 = vmul.f32 %v284, %v283
    %v286 = vmul.f32 0.5, %v285
    %v287 = vsub.f32 1.5, %v286
    %v288 = vmul.f32 %v283, %v287
    %v289 = vmul.f32 %v267, %v288
    %vm290 = vcmp.eq.f32.partialorder %v267, inf
    %v291 = vsel %vm290, %v267, %v289
    %vm292 = vcmp.eq.f32.partialorder %v267, 0.0
    %v293 = vand.u32 %v267, 2147483648
    %v294 = vsel %vm292, %v293, %v291
    %vm295 = vcmask 57344
    %296 = vst.msk [vmem:[#allocation2] sm:$0x1] %vm295, %v294
    // Predicated region
    $region30: #{tpu_custom_call.1} parent=1 // pred_check
      _
    $region31: #{tpu_custom_call.1} parent=1 // pred_check_branch
      %298 = sbr.rel (0) target = $region33
    $region32: #{tpu_custom_call.1} parent=1 // pred_region
      %300 = vsyncadd [#allocation3], 0
      %s302 = sshll.u32 [#allocation2], 4
      %s303 = int_to_ptr.vmem [resolvable:$true] %s302
      %s304 = sshll.u32 %s7, 4
      %s305 = int_to_ptr.hbm [resolvable:$true] %s304
      %307 = dma.vmem_to_hbm [thread:$0]  %s303, 16, %s305, [#allocation3]
    $region33: #{tpu_custom_call.1} parent=1 // pred_fallthru
      _
    // Predicated region
    $region34: #{tpu_custom_call.1} parent=1 // pred_check
      _
    $region35: #{tpu_custom_call.1} parent=1 // pred_check_branch
      %309 = sbr.rel (0) target = $region37
    $region36: #{tpu_custom_call.1} parent=1 // pred_region
      %311 = dma.done [#allocation3], 16
    $region37: #{tpu_custom_call.1} parent=1 // pred_fallthru
      _
    %312 = vsyncpa [#allocation3], 1

</llo_original>
